<compile_context>
chip_gen: v6e
topology: v6e:2x2x1
jax: 0.10.0
libtpu: 0.0.40
codegen_flags: <defaults>
</compile_context>

<pallas_src>
import functools

import jax
import jax.numpy as jnp
from jax import lax
from jax.experimental import pallas as pl
from jax.experimental.pallas import tpu as pltpu


def _prompt_kernel(name_lens_ref, src_ref, out_ref, *, n_ctx, block_cls):
    """Permute B classes' fused [prefix|ctx|suffix] rows into prompt order.

    name_lens_ref: SMEM int32[n_cls_padded]   (scalar prefetch)
    src_ref      : VMEM (B, S, D)  fused [prefix | ctx(shuffled) | suffix]
    out_ref      : VMEM (B, S, D)
    """
    half = n_ctx // 2
    seq_len = out_ref.shape[1]
    base = pl.program_id(0) * block_cls

    # Hoisted iotas:
    #   j = output row index (S,1), k = candidate source row index (S,S).
    j = lax.broadcasted_iota(jnp.int32, (seq_len, 1), 0)
    k = lax.broadcasted_iota(jnp.int32, (seq_len, seq_len), 1)

    for b in range(block_cls):                     # static unroll over the block
        nl = name_lens_ref[base + b]               # dynamic name length (SMEM)

        # Source-row index for each output row j (src = [prefix|ctx|suffix]):
        #   j == 0                        -> j              (prefix)
        #   1          <= j < 1+half      -> j              (ctx half 1)
        #   1+half     <= j < 1+half+nl   -> j + n_ctx-half (class tokens)
        #   1+half+nl  <= j < 1+n_ctx+nl  -> j - nl         (ctx half 2)
        #   1+n_ctx+nl <= j               -> j              (rest of suffix)
        in_class = (j >= 1 + half) & (j < 1 + half + nl)
        in_half2 = (j >= 1 + half + nl) & (j < 1 + n_ctx + nl)
        k_tgt = jnp.where(in_class, j + (n_ctx - half),
                          jnp.where(in_half2, j - nl, j))

        # (S, S) one-hot permutation matrix in the embedding dtype (exact for
        # 0/1), applied with a single MXU matmul; single nonzero per row keeps
        # the result bit-identical to a gather.
        sel = (k == k_tgt).astype(src_ref.dtype)
        out_ref[b] = jnp.dot(sel, src_ref[b],
                             preferred_element_type=jnp.float32
                             ).astype(out_ref.dtype)


def prompt_learner_forward(name_lens, prefix, ctx, suffix, *, block_cls=16):
    """name_lens: int[n_cls]; prefix: (n_cls,1,D); ctx: (n_cls,n_ctx,D) (already
    shuffled); suffix: (n_cls, suf_len, D). Returns (n_cls, 1+n_ctx+suf_len, D)."""
    n_cls, n_ctx, D = ctx.shape
    suf_len = suffix.shape[1]
    seq_len = 1 + n_ctx + suf_len

    # Fuse the three buffers into one lane-dense source slab per class
    # (layout plumbing in the wrapper; removes the tiny prefix DMAs and lets
    # the kernel use a single selector matmul).
    src = jnp.concatenate([prefix, ctx, suffix], axis=1)   # (n_cls, seq_len, D)

    # Guard: the reference loop assumes 0 <= name_len <= suf_len; clamping
    # keeps valid inputs bit-identical and prevents silent row drops.
    name_lens = jnp.clip(name_lens.astype(jnp.int32), 0, suf_len)

    b = max(1, min(block_cls, n_cls))
    n_pad = pl.cdiv(n_cls, b) * b
    if n_pad != n_cls:
        # Padded classes get name_len=0 -> identity permutation on zero rows.
        src = jnp.pad(src, ((0, n_pad - n_cls), (0, 0), (0, 0)))
        name_lens = jnp.pad(name_lens, (0, n_pad - n_cls))

    grid_spec = pltpu.PrefetchScalarGridSpec(
        num_scalar_prefetch=1,
        grid=(n_pad // b,),
        in_specs=[pl.BlockSpec((b, seq_len, D), lambda i, nl: (i, 0, 0))],
        out_specs=pl.BlockSpec((b, seq_len, D), lambda i, nl: (i, 0, 0)),
    )
    out = pl.pallas_call(
        functools.partial(_prompt_kernel, n_ctx=n_ctx, block_cls=b),
        out_shape=jax.ShapeDtypeStruct((n_pad, seq_len, D), ctx.dtype),
        grid_spec=grid_spec,
        compiler_params=pltpu.CompilerParams(
            dimension_semantics=("parallel",)),   # v7x: shard classes over 2 TCs
    )(name_lens, src)
    return out[:n_cls]


def reference_forward(name_lens, prefix, ctx, suffix):
    """Pure-JAX replica of the PyTorch per-class concatenation loop."""
    half = ctx.shape[1] // 2
    outs = []
    for i in range(ctx.shape[0]):
        nl = int(name_lens[i])
        prompt = jnp.concatenate(
            [prefix[i:i + 1],
             ctx[i:i + 1, :half],
             suffix[i:i + 1, :nl],
             ctx[i:i + 1, half:],
             suffix[i:i + 1, nl:]],
            axis=1)
        outs.append(prompt)
    return jnp.concatenate(outs, axis=0)


if __name__ == "__main__":
    # Small deterministic configuration consistent with the module:
    #   n_ctx = 12 (fixed in __init__); small n_cls / seq; D=128 keeps the
    #   output lane-dense (production CLIP D=512/768 is also a multiple of 128).
    n_cls = 8
    n_ctx = 12
    ctx_dim = 128
    seq_len = 24                      # total prompt length (CLIP uses 77)
    suf_len = seq_len - 1 - n_ctx     # = 11 suffix tokens

    key = jax.random.PRNGKey(0)
    k_ctx, k_emb, k_perm = jax.random.split(key, 3)

    # nn.init.normal_(ctx_vectors, std=0.02)
    ctx = 0.02 * jax.random.normal(k_ctx, (n_cls, n_ctx, ctx_dim), jnp.float32)

    # synthetic token_embedding output -> prefix / suffix buffers
    embedding = jax.random.normal(k_emb, (n_cls, seq_len, ctx_dim), jnp.float32)
    prefix = embedding[:, :1, :]                 # token_prefix
    suffix = embedding[:, 1 + n_ctx:, :]         # token_suffix

    # synthetic per-class tokenized name lengths (name_lens in the module)
    name_lens = jnp.array([1, 2, 3, 2, 4, 1, 5, 3], dtype=jnp.int32)

    # _ctx_shuffle: deterministic permutation of the n_ctx context tokens
    # (torch.randperm replaced by a fixed-key jax permutation).
    perm = jax.random.permutation(k_perm, n_ctx)
    ctx_shuffled = ctx[:, perm, :]

    out = prompt_learner_forward(name_lens, prefix, ctx_shuffled, suffix,
                                 block_cls=4)   # 2 grid steps, 4 classes/block
    out = jax.block_until_ready(out)

    ref = reference_forward(name_lens, prefix, ctx_shuffled, suffix)
    assert out.shape == (n_cls, seq_len, ctx_dim)
    assert jnp.allclose(out, ref, atol=1e-5, rtol=1e-5)

    print("KERNEL_OK")
</pallas_src>

<mosaic_0001>
module attributes {stable_mosaic.version = 11 : i64} {
  func.func @_prompt_kernel(%arg0: i32, %arg1: memref<8xi32, #tpu.memory_space<smem>>, %arg2: memref<4x24x128xf32, #tpu.memory_space<vmem>>, %arg3: memref<4x24x128xf32, #tpu.memory_space<vmem>>) attributes {dimension_semantics = [#tpu.dimension_semantics<parallel>], iteration_bounds = array<i64: 2>, scalar_prefetch = 1 : i64, scratch_operands = 0 : i64, tpu.core_type = #tpu.core_type<tc>, window_params = [{transform_indices = @transform_0, window_bounds = array<i64: 4, 24, 128>}, {transform_indices = @transform_1, window_bounds = array<i64: 4, 24, 128>}]} {
    %c4_i32 = arith.constant 4 : i32
    %0 = arith.muli %arg0, %c4_i32 : i32
    %1 = tpu.iota {dimensions = array<i32: 0>} : vector<24x1xi32>
    %2 = tpu.iota {dimensions = array<i32: 1>} : vector<24x24xi32>
    %c0_i32 = arith.constant 0 : i32
    %3 = arith.addi %0, %c0_i32 : i32
    %4 = arith.index_cast %3 : i32 to index
    %5 = memref.load %arg1[%4] : memref<8xi32, #tpu.memory_space<smem>>
    %c7_i32 = arith.constant 7 : i32
    %6 = vector.broadcast %c7_i32 : i32 to vector<24x1xi32>
    %7 = arith.cmpi sge, %1, %6 : vector<24x1xi32>
    %c7_i32_0 = arith.constant 7 : i32
    %8 = arith.addi %c7_i32_0, %5 : i32
    %9 = vector.broadcast %8 : i32 to vector<24x1xi32>
    %10 = arith.cmpi slt, %1, %9 : vector<24x1xi32>
    %11 = arith.andi %7, %10 : vector<24x1xi1>
    %c7_i32_1 = arith.constant 7 : i32
    %12 = arith.addi %c7_i32_1, %5 : i32
    %13 = vector.broadcast %12 : i32 to vector<24x1xi32>
    %14 = arith.cmpi sge, %1, %13 : vector<24x1xi32>
    %c13_i32 = arith.constant 13 : i32
    %15 = arith.addi %c13_i32, %5 : i32
    %16 = vector.broadcast %15 : i32 to vector<24x1xi32>
    %17 = arith.cmpi slt, %1, %16 : vector<24x1xi32>
    %18 = arith.andi %14, %17 : vector<24x1xi1>
    %c6_i32 = arith.constant 6 : i32
    %19 = vector.broadcast %c6_i32 : i32 to vector<24x1xi32>
    %20 = arith.addi %1, %19 : vector<24x1xi32>
    %21 = vector.broadcast %5 : i32 to vector<24x1xi32>
    %22 = arith.subi %1, %21 : vector<24x1xi32>
    %23 = arith.select %18, %22, %1 : vector<24x1xi1>, vector<24x1xi32>
    %24 = arith.select %11, %20, %23 : vector<24x1xi1>, vector<24x1xi32>
    %25 = vector.broadcast %24 : vector<24x1xi32> to vector<24x24xi32>
    %26 = arith.cmpi eq, %2, %25 : vector<24x24xi32>
    %27 = arith.extui %26 : vector<24x24xi1> to vector<24x24xi32>
    %28 = arith.sitofp %27 : vector<24x24xi32> to vector<24x24xf32>
    %c0 = arith.constant 0 : index
    %c0_2 = arith.constant 0 : index
    %c0_3 = arith.constant 0 : index
    %29 = vector.load %arg2[%c0, %c0_2, %c0_3] : memref<4x24x128xf32, #tpu.memory_space<vmem>>, vector<1x24x128xf32>
    %30 = vector.shape_cast %29 : vector<1x24x128xf32> to vector<24x128xf32>
    %cst = arith.constant dense<0.000000e+00> : vector<24x128xf32>
    %31 = tpu.matmul %28, %30, %cst {dimension_numbers = #tpu.dot_dimension_numbers<[1], [0], [0], [1], [0, 0, 1, 1], [], []>} : vector<24x24xf32>, vector<24x128xf32>, vector<24x128xf32> -> vector<24x128xf32>
    %c0_4 = arith.constant 0 : index
    %c0_5 = arith.constant 0 : index
    %c0_6 = arith.constant 0 : index
    %32 = vector.load %arg3[%c0_4, %c0_5, %c0_6] : memref<4x24x128xf32, #tpu.memory_space<vmem>>, vector<1x24x128xf32>
    %33 = vector.shape_cast %32 : vector<1x24x128xf32> to vector<24x128xf32>
    %34 = vector.shape_cast %31 : vector<24x128xf32> to vector<1x24x128xf32>
    tpu.vector_store %arg3[%c0_4, %c0_5, %c0_6], %34 {strides = array<i32>} : memref<4x24x128xf32, #tpu.memory_space<vmem>>, vector<1x24x128xf32>,
    %c1_i32 = arith.constant 1 : i32
    %35 = arith.addi %0, %c1_i32 : i32
    %36 = arith.index_cast %35 : i32 to index
    %37 = memref.load %arg1[%36] : memref<8xi32, #tpu.memory_space<smem>>
    %c7_i32_7 = arith.constant 7 : i32
    %38 = vector.broadcast %c7_i32_7 : i32 to vector<24x1xi32>
    %39 = arith.cmpi sge, %1, %38 : vector<24x1xi32>
    %c7_i32_8 = arith.constant 7 : i32
    %40 = arith.addi %c7_i32_8, %37 : i32
    %41 = vector.broadcast %40 : i32 to vector<24x1xi32>
    %42 = arith.cmpi slt, %1, %41 : vector<24x1xi32>
    %43 = arith.andi %39, %42 : vector<24x1xi1>
    %c7_i32_9 = arith.constant 7 : i32
    %44 = arith.addi %c7_i32_9, %37 : i32
    %45 = vector.broadcast %44 : i32 to vector<24x1xi32>
    %46 = arith.cmpi sge, %1, %45 : vector<24x1xi32>
    %c13_i32_10 = arith.constant 13 : i32
    %47 = arith.addi %c13_i32_10, %37 : i32
    %48 = vector.broadcast %47 : i32 to vector<24x1xi32>
    %49 = arith.cmpi slt, %1, %48 : vector<24x1xi32>
    %50 = arith.andi %46, %49 : vector<24x1xi1>
    %c6_i32_11 = arith.constant 6 : i32
    %51 = vector.broadcast %c6_i32_11 : i32 to vector<24x1xi32>
    %52 = arith.addi %1, %51 : vector<24x1xi32>
    %53 = vector.broadcast %37 : i32 to vector<24x1xi32>
    %54 = arith.subi %1, %53 : vector<24x1xi32>
    %55 = arith.select %50, %54, %1 : vector<24x1xi1>, vector<24x1xi32>
    %56 = arith.select %43, %52, %55 : vector<24x1xi1>, vector<24x1xi32>
    %57 = vector.broadcast %56 : vector<24x1xi32> to vector<24x24xi32>
    %58 = arith.cmpi eq, %2, %57 : vector<24x24xi32>
    %59 = arith.extui %58 : vector<24x24xi1> to vector<24x24xi32>
    %60 = arith.sitofp %59 : vector<24x24xi32> to vector<24x24xf32>
    %c1 = arith.constant 1 : index
    %c0_12 = arith.constant 0 : index
    %c0_13 = arith.constant 0 : index
    %61 = vector.load %arg2[%c1, %c0_12, %c0_13] : memref<4x24x128xf32, #tpu.memory_space<vmem>>, vector<1x24x128xf32>
    %62 = vector.shape_cast %61 : vector<1x24x128xf32> to vector<24x128xf32>
    %cst_14 = arith.constant dense<0.000000e+00> : vector<24x128xf32>
    %63 = tpu.matmul %60, %62, %cst_14 {dimension_numbers = #tpu.dot_dimension_numbers<[1], [0], [0], [1], [0, 0, 1, 1], [], []>} : vector<24x24xf32>, vector<24x128xf32>, vector<24x128xf32> -> vector<24x128xf32>
    %c1_15 = arith.constant 1 : index
    %c0_16 = arith.constant 0 : index
    %c0_17 = arith.constant 0 : index
    %64 = vector.load %arg3[%c1_15, %c0_16, %c0_17] : memref<4x24x128xf32, #tpu.memory_space<vmem>>, vector<1x24x128xf32>
    %65 = vector.shape_cast %64 : vector<1x24x128xf32> to vector<24x128xf32>
    %66 = vector.shape_cast %63 : vector<24x128xf32> to vector<1x24x128xf32>
    tpu.vector_store %arg3[%c1_15, %c0_16, %c0_17], %66 {strides = array<i32>} : memref<4x24x128xf32, #tpu.memory_space<vmem>>, vector<1x24x128xf32>,
    %c2_i32 = arith.constant 2 : i32
    %67 = arith.addi %0, %c2_i32 : i32
    %68 = arith.index_cast %67 : i32 to index
    %69 = memref.load %arg1[%68] : memref<8xi32, #tpu.memory_space<smem>>
    %c7_i32_18 = arith.constant 7 : i32
    %70 = vector.broadcast %c7_i32_18 : i32 to vector<24x1xi32>
    %71 = arith.cmpi sge, %1, %70 : vector<24x1xi32>
    %c7_i32_19 = arith.constant 7 : i32
    %72 = arith.addi %c7_i32_19, %69 : i32
    %73 = vector.broadcast %72 : i32 to vector<24x1xi32>
    %74 = arith.cmpi slt, %1, %73 : vector<24x1xi32>
    %75 = arith.andi %71, %74 : vector<24x1xi1>
    %c7_i32_20 = arith.constant 7 : i32
    %76 = arith.addi %c7_i32_20, %69 : i32
    %77 = vector.broadcast %76 : i32 to vector<24x1xi32>
    %78 = arith.cmpi sge, %1, %77 : vector<24x1xi32>
    %c13_i32_21 = arith.constant 13 : i32
    %79 = arith.addi %c13_i32_21, %69 : i32
    %80 = vector.broadcast %79 : i32 to vector<24x1xi32>
    %81 = arith.cmpi slt, %1, %80 : vector<24x1xi32>
    %82 = arith.andi %78, %81 : vector<24x1xi1>
    %c6_i32_22 = arith.constant 6 : i32
    %83 = vector.broadcast %c6_i32_22 : i32 to vector<24x1xi32>
    %84 = arith.addi %1, %83 : vector<24x1xi32>
    %85 = vector.broadcast %69 : i32 to vector<24x1xi32>
    %86 = arith.subi %1, %85 : vector<24x1xi32>
    %87 = arith.select %82, %86, %1 : vector<24x1xi1>, vector<24x1xi32>
    %88 = arith.select %75, %84, %87 : vector<24x1xi1>, vector<24x1xi32>
    %89 = vector.broadcast %88 : vector<24x1xi32> to vector<24x24xi32>
    %90 = arith.cmpi eq, %2, %89 : vector<24x24xi32>
    %91 = arith.extui %90 : vector<24x24xi1> to vector<24x24xi32>
    %92 = arith.sitofp %91 : vector<24x24xi32> to vector<24x24xf32>
    %c2 = arith.constant 2 : index
    %c0_23 = arith.constant 0 : index
    %c0_24 = arith.constant 0 : index
    %93 = vector.load %arg2[%c2, %c0_23, %c0_24] : memref<4x24x128xf32, #tpu.memory_space<vmem>>, vector<1x24x128xf32>
    %94 = vector.shape_cast %93 : vector<1x24x128xf32> to vector<24x128xf32>
    %cst_25 = arith.constant dense<0.000000e+00> : vector<24x128xf32>
    %95 = tpu.matmul %92, %94, %cst_25 {dimension_numbers = #tpu.dot_dimension_numbers<[1], [0], [0], [1], [0, 0, 1, 1], [], []>} : vector<24x24xf32>, vector<24x128xf32>, vector<24x128xf32> -> vector<24x128xf32>
    %c2_26 = arith.constant 2 : index
    %c0_27 = arith.constant 0 : index
    %c0_28 = arith.constant 0 : index
    %96 = vector.load %arg3[%c2_26, %c0_27, %c0_28] : memref<4x24x128xf32, #tpu.memory_space<vmem>>, vector<1x24x128xf32>
    %97 = vector.shape_cast %96 : vector<1x24x128xf32> to vector<24x128xf32>
    %98 = vector.shape_cast %95 : vector<24x128xf32> to vector<1x24x128xf32>
    tpu.vector_store %arg3[%c2_26, %c0_27, %c0_28], %98 {strides = array<i32>} : memref<4x24x128xf32, #tpu.memory_space<vmem>>, vector<1x24x128xf32>,
    %c3_i32 = arith.constant 3 : i32
    %99 = arith.addi %0, %c3_i32 : i32
    %100 = arith.index_cast %99 : i32 to index
    %101 = memref.load %arg1[%100] : memref<8xi32, #tpu.memory_space<smem>>
    %c7_i32_29 = arith.constant 7 : i32
    %102 = vector.broadcast %c7_i32_29 : i32 to vector<24x1xi32>
    %103 = arith.cmpi sge, %1, %102 : vector<24x1xi32>
    %c7_i32_30 = arith.constant 7 : i32
    %104 = arith.addi %c7_i32_30, %101 : i32
    %105 = vector.broadcast %104 : i32 to vector<24x1xi32>
    %106 = arith.cmpi slt, %1, %105 : vector<24x1xi32>
    %107 = arith.andi %103, %106 : vector<24x1xi1>
    %c7_i32_31 = arith.constant 7 : i32
    %108 = arith.addi %c7_i32_31, %101 : i32
    %109 = vector.broadcast %108 : i32 to vector<24x1xi32>
    %110 = arith.cmpi sge, %1, %109 : vector<24x1xi32>
    %c13_i32_32 = arith.constant 13 : i32
    %111 = arith.addi %c13_i32_32, %101 : i32
    %112 = vector.broadcast %111 : i32 to vector<24x1xi32>
    %113 = arith.cmpi slt, %1, %112 : vector<24x1xi32>
    %114 = arith.andi %110, %113 : vector<24x1xi1>
    %c6_i32_33 = arith.constant 6 : i32
    %115 = vector.broadcast %c6_i32_33 : i32 to vector<24x1xi32>
    %116 = arith.addi %1, %115 : vector<24x1xi32>
    %117 = vector.broadcast %101 : i32 to vector<24x1xi32>
    %118 = arith.subi %1, %117 : vector<24x1xi32>
    %119 = arith.select %114, %118, %1 : vector<24x1xi1>, vector<24x1xi32>
    %120 = arith.select %107, %116, %119 : vector<24x1xi1>, vector<24x1xi32>
    %121 = vector.broadcast %120 : vector<24x1xi32> to vector<24x24xi32>
    %122 = arith.cmpi eq, %2, %121 : vector<24x24xi32>
    %123 = arith.extui %122 : vector<24x24xi1> to vector<24x24xi32>
    %124 = arith.sitofp %123 : vector<24x24xi32> to vector<24x24xf32>
    %c3 = arith.constant 3 : index
    %c0_34 = arith.constant 0 : index
    %c0_35 = arith.constant 0 : index
    %125 = vector.load %arg2[%c3, %c0_34, %c0_35] : memref<4x24x128xf32, #tpu.memory_space<vmem>>, vector<1x24x128xf32>
    %126 = vector.shape_cast %125 : vector<1x24x128xf32> to vector<24x128xf32>
    %cst_36 = arith.constant dense<0.000000e+00> : vector<24x128xf32>
    %127 = tpu.matmul %124, %126, %cst_36 {dimension_numbers = #tpu.dot_dimension_numbers<[1], [0], [0], [1], [0, 0, 1, 1], [], []>} : vector<24x24xf32>, vector<24x128xf32>, vector<24x128xf32> -> vector<24x128xf32>
    %c3_37 = arith.constant 3 : index
    %c0_38 = arith.constant 0 : index
    %c0_39 = arith.constant 0 : index
    %128 = vector.load %arg3[%c3_37, %c0_38, %c0_39] : memref<4x24x128xf32, #tpu.memory_space<vmem>>, vector<1x24x128xf32>
    %129 = vector.shape_cast %128 : vector<1x24x128xf32> to vector<24x128xf32>
    %130 = vector.shape_cast %127 : vector<24x128xf32> to vector<1x24x128xf32>
    tpu.vector_store %arg3[%c3_37, %c0_38, %c0_39], %130 {strides = array<i32>} : memref<4x24x128xf32, #tpu.memory_space<vmem>>, vector<1x24x128xf32>,
    return
  }
  func.func @transform_0(%arg0: i32, %arg1: memref<8xi32, #tpu.memory_space<smem>>) -> (i32, i32, i32) {
    %c0_i32 = arith.constant 0 : i32
    %c0_i32_0 = arith.constant 0 : i32
    %c0_i32_1 = arith.constant 0 : i32
    return %arg0, %c0_i32, %c0_i32_0 : i32, i32, i32
  }
  func.func @transform_1(%arg0: i32, %arg1: memref<8xi32, #tpu.memory_space<smem>>) -> (i32, i32, i32) {
    %c0_i32 = arith.constant 0 : i32
    %c0_i32_0 = arith.constant 0 : i32
    %c0_i32_1 = arith.constant 0 : i32
    return %arg0, %c0_i32, %c0_i32_0 : i32, i32, i32
  }
}

</mosaic_0001>

<llo_original>
// kernel: tpu_custom_call.1
$region0: #{tpu_custom_call.1}
  #allocation0 [shape = 'u32[]', space=smem, size = 0x4, offset = 0x4, fixed_abs, tag = 'smem constant byte address 0x4 - core index']
  #allocation1 [shape = 'u32[144,128]{1,0:T(1,128)}', space=vmem, size = 0x12000, scoped, tag = 'internal scratch']
  #allocation2 [shape = 's32[1]{0}', space=sflag, size = 0x4, scoped, tag = 'scoped memory for tpu_custom_call.1']
  #allocation3 [shape = 'u8[512]{0}', space=smem, size = 0x200, scoped, tag = 'prefetched SMEM operand 0']
  %s0 = inlined_call_operand.hbm [shape: s32[8], index: 0, kind: input, shape index: {}]
  %s1 = inlined_call_operand.hbm [shape: f32[8,24,128], index: 1, kind: input, shape index: {}]
  %s2 = inlined_call_operand.hbm [shape: f32[8,24,128], index: 2, kind: output, shape index: {}]
  %s3 = sld [smem:[#allocation0]]
  $region41: #{tpu_custom_call.1} parent=0
    _
  %s5 = ssub.s32 1, %s3
  %s6 = scalar_select 0, %s5, %s3
  %8 = dma.hbm_to_smem %s0, 16, [#allocation3], [#allocation2]
  %9 = dma.done [#allocation2], 16
  %10 = sfence
  $region1: #{tpu_custom_call.1} parent=0
    #allocation4 [shape = 'u8[98304]{0}', space=vmem, size = 0x18000, scoped, tag = 'input window, operand 1']
    #allocation5 [shape = 's32[2]{0}', space=sflag, size = 0x8, scoped, tag = 'scoped memory for tpu_custom_call.1']
    #allocation6 [shape = 's32[2]{0}', space=sflag, size = 0x8, scoped, tag = 'scoped memory for tpu_custom_call.1']
    #allocation7 [shape = 'u8[98304]{0}', space=vmem, size = 0x18000, scoped, tag = 'output window, operand 0']
    %11 = vsyncpa [#allocation5], 0
    %s12 = scalar_lea.sflag [#allocation5], 1
    %13 = vsyncpa %s12, 0
    %14 = vsyncpa [#allocation6], 0
    %s15 = scalar_lea.sflag [#allocation6], 1
    %16 = vsyncpa %s15, 0
    loop: start=0, step=1, limit=4
    $region2: #{tpu_custom_call.1} parent=1 // loop_pre_header
      _
    $region3: #{tpu_custom_call.1} parent=1 // loop_header
      %s18 = sphi 0, %s22
      %p19 = scmp.ge.s32.totalorder %s18, 4
      %s28 = sphi 0, %s30
      %s31 = sphi 0, %s28
      %s32 = sphi 0, %s31
      %s48 = sphi 0, %s32
      %s54 = sphi 0, %s56
      %s57 = sphi 0, %s54
      %s58 = sphi 0, %s57
      %s74 = sphi 0, %s58
    $region4: #{tpu_custom_call.1} parent=1 // loop_header_branch
      %21 = sbr.rel (%p19) target = $region8
    $region5: #{tpu_custom_call.1} parent=1 // loop_body
      %s23 = ssub.s32 %s18, 1
      %s24 = ssub.s32 %s18, 2
      %s25 = sadd.s32 %s18, 1
      %s26 = ssub.s32 %s18, %s25
      %p27 = scmp.eq.s32.totalorder %s26, 0
      %s29 = sadd.s32 %s28, 1
      %s30 = scalar_select %p27, %s28, %s29
      %p33 = pneg %p27
      %p34 = scmp.eq.s32.totalorder %s18, 1
      %p35 = por %p33, %p34
      %p36 = scmp.ne.s32.totalorder %s28, %s31
      %p37 = scmp.eq.s32.totalorder %s18, 0
      %p38 = por %p36, %p37
      %p39 = scmp.ne.s32.totalorder %s28, %s31
      %p40 = scmp.eq.s32.totalorder %s23, 1
      %p41 = por %p39, %p40
      %p42 = scmp.ne.s32.totalorder %s31, %s32
      %p43 = scmp.eq.s32.totalorder %s23, 0
      %p44 = por %p42, %p43
      %p45 = scmp.ne.s32.totalorder %s31, %s32
      %p46 = scmp.eq.s32.totalorder %s24, 1
      %p47 = por %p45, %p46
      %p49 = scmp.ne.s32.totalorder %s32, %s48
      %p50 = scmp.eq.s32.totalorder %s24, 0
      %p51 = por %p49, %p50
      %s52 = ssub.s32 %s18, %s25
      %p53 = scmp.eq.s32.totalorder %s52, 0
      %s55 = sadd.s32 %s54, 1
      %s56 = scalar_select %p53, %s54, %s55
      %p59 = pneg %p53
      %p60 = scmp.eq.s32.totalorder %s18, 1
      %p61 = por %p59, %p60
      %p62 = scmp.ne.s32.totalorder %s54, %s57
      %p63 = scmp.eq.s32.totalorder %s18, 0
      %p64 = por %p62, %p63
      %p65 = scmp.ne.s32.totalorder %s54, %s57
      %p66 = scmp.eq.s32.totalorder %s23, 1
      %p67 = por %p65, %p66
      %p68 = scmp.ne.s32.totalorder %s57, %s58
      %p69 = scmp.eq.s32.totalorder %s23, 0
      %p70 = por %p68, %p69
      %p71 = scmp.ne.s32.totalorder %s57, %s58
      %p72 = scmp.eq.s32.totalorder %s24, 1
      %p73 = por %p71, %p72
      %p75 = scmp.ne.s32.totalorder %s58, %s74
      %p76 = scmp.eq.s32.totalorder %s24, 0
      %p77 = por %p75, %p76
      %p78 = scmp.le.s32.totalorder 1, %s18
      %p79 = scmp.lt.s32.totalorder %s18, 3
      %p80 = pnand %p78, %p79
      %p81 = pneg %p80
      // Predicated region
      $region9: #{tpu_custom_call.1} parent=5 // pred_check
        _
      $region10: #{tpu_custom_call.1} parent=5 // pred_check_branch
        %83 = sbr.rel (%p80) target = $region12
      $region11: #{tpu_custom_call.1} parent=5 // pred_region
        %s84 = ssub.s32 %s18, 1
      $region12: #{tpu_custom_call.1} parent=5 // pred_fallthru
        _
      %p85 = scmp.lt.s32.totalorder %s18, 2
      // Predicated region
      $region13: #{tpu_custom_call.1} parent=5 // pred_check
        %p86 = pneg %p85
      $region14: #{tpu_custom_call.1} parent=5 // pred_check_branch
        %88 = sbr.rel (%p86) target = $region16
      $region15: #{tpu_custom_call.1} parent=5 // pred_region
        // Predicated region
        $region17: #{tpu_custom_call.1} parent=15 // pred_check
          %p89 = pneg %p38
        $region18: #{tpu_custom_call.1} parent=15 // pred_check_branch
          %91 = sbr.rel (%p89) target = $region20
        $region19: #{tpu_custom_call.1} parent=15 // pred_region
          %s92 = sand.u32 %s28, 1
          %s93 = scalar_lea.sflag [#allocation5], %s92
          %s94 = sand.u32 %s28, 1
          %s95 = smul.addr %s94, 96
          %s96 = scalar_lea.vmem [#allocation4], %s95
          %s97 = smul.u32 4, %s18
          %s99 = ssub.s32 1536, 1536
          %100 = vsyncadd %s93, %s99
          %s101 = smul.addr %s97, 3
          %s102 = smul.addr %s101, 128
          %s103 = scalar_lea.hbm %s1, %s102
          %s104 = sshll.u32 %s96, 4
          %s105 = int_to_ptr.vmem [resolvable:$true] %s104
          %110 = dma.hbm_to_vmem [thread:$0]  %s103, 1536, %s105, %s93, 128, 128, 8
        $region20: #{tpu_custom_call.1} parent=15 // pred_fallthru
          _
      $region16: #{tpu_custom_call.1} parent=5 // pred_fallthru
        _
      %p111 = scmp.le.s32.totalorder 1, %s18
      %p112 = scmp.lt.s32.totalorder %s18, 3
      %p113 = pnand %p111, %p112
      %p114 = pneg %p113
      // Predicated region
      $region21: #{tpu_custom_call.1} parent=5 // pred_check
        _
      $region22: #{tpu_custom_call.1} parent=5 // pred_check_branch
        %116 = sbr.rel (%p113) target = $region24
      $region23: #{tpu_custom_call.1} parent=5 // pred_region
        %s117 = ssub.s32 %s18, 1
        %s118 = sand.u32 %s31, 1
        %s119 = scalar_lea.sflag [#allocation5], %s118
        %s120 = sand.u32 %s31, 1
        %s121 = smul.addr %s120, 96
        %s122 = scalar_lea.vmem [#allocation4], %s121
        // Predicated region
        $region25: #{tpu_custom_call.1} parent=23 // pred_check
          %p123 = pneg %p44
        $region26: #{tpu_custom_call.1} parent=23 // pred_check_branch
          %125 = sbr.rel (%p123) target = $region28
        $region27: #{tpu_custom_call.1} parent=23 // pred_region
          %126 = dma.done %s119, 1536
        $region28: #{tpu_custom_call.1} parent=23 // pred_fallthru
          _
        %s127 = sand.u32 %s31, 1
        %s128 = scalar_lea.sflag [#allocation5], %s127
        %s129 = sand.u32 %s31, 1
        %s130 = smul.addr %s129, 96
        %s131 = scalar_lea.vmem [#allocation4], %s130
        %p132 = pneg %p44
        %p133 = pneg %p41
        %p134 = pneg %p70
        %p135 = pneg %p67
        %s136 = sand.u32 %s57, 1
        %s137 = scalar_lea.sflag [#allocation6], %s136
        %s138 = sand.u32 %s57, 1
        %s139 = smul.addr %s138, 96
        %s140 = scalar_lea.vmem [#allocation7], %s139
        %s141 = smul.u32 4, %s23
        %s142 = smul.u32 4, %s23
        %s143 = smul.u32 %s23, 4
        %v144 = vlaneseq
        %v145 = vshrl.u32 %v144, 7
        %v146 = vadd.s32 %v145, 8
        %v147 = vadd.s32 %v145, 16
        %v148 = vlaneseq
        %v149 = vand.u32 %v148, 127
        %s150 = sld [smem:[#allocation3 + %s143]]
        %vm151 = vcmp.ge.s32.totalorder %v145, 7
        %vm152 = vcmp.ge.s32.totalorder %v146, 7
        %vm153 = vcmp.ge.s32.totalorder %v147, 7
        %s154 = sadd.s32 %s150, 7
        %v155 = vstv %s154
        %vm156 = vcmp.lt.s32.totalorder %v145, %v155
        %vm157 = vcmp.lt.s32.totalorder %v146, %v155
        %vm158 = vcmp.lt.s32.totalorder %v147, %v155
        %vm159 = vmand %vm151, %vm156
        %vm160 = vmand %vm152, %vm157
        %vm161 = vmand %vm153, %vm158
        %vm162 = vcmp.ge.s32.totalorder %v145, %v155
        %vm163 = vcmp.ge.s32.totalorder %v146, %v155
        %vm164 = vcmp.ge.s32.totalorder %v147, %v155
        %s165 = sadd.s32 %s150, 13
        %v166 = vstv %s165
        %vm167 = vcmp.lt.s32.totalorder %v145, %v166
        %vm168 = vcmp.lt.s32.totalorder %v146, %v166
        %vm169 = vcmp.lt.s32.totalorder %v147, %v166
        %vm170 = vmand %vm162, %vm167
        %vm171 = vmand %vm163, %vm168
        %vm172 = vmand %vm164, %vm169
        %v173 = vadd.s32 %v145, 6
        %v174 = vadd.s32 %v146, 6
        %v175 = vadd.s32 %v147, 6
        %v176 = vstv %s150
        %v177 = vsub.s32 %v145, %v176
        %v178 = vsub.s32 %v146, %v176
        %v179 = vsub.s32 %v147, %v176
        %v180 = vsel %vm170, %v177, %v145
        %v181 = vsel %vm171, %v178, %v146
        %v182 = vsel %vm172, %v179, %v147
        %v183 = vsel %vm159, %v173, %v180
        %v184 = vsel %vm160, %v174, %v181
        %v185 = vsel %vm161, %v175, %v182
        %vm186 = vcmp.eq.s32.totalorder %v149, %v183
        %vm187 = vcmp.eq.s32.totalorder %v149, %v184
        %vm188 = vcmp.eq.s32.totalorder %v149, %v185
        %v189 = vsel %vm186, 1, 0
        %v190 = vsel %vm187, 1, 0
        %v191 = vsel %vm188, 1, 0
        %v192 = vcvt.s32.f32 %v189
        %v193 = vcvt.s32.f32 %v190
        %v194 = vcvt.s32.f32 %v191
        %v195 = vld [vmem:[%s122] sm:$0xff]
        %v196 = vld [vmem:[%s122 + $0x8] sm:$0xff]
        %v197 = vld [vmem:[%s122 + $0x10] sm:$0xff]
        %vm198 = vcmask 195584
        %v200 = vsel %vm198, %v192, 0
        %v203 = vsel %vm198, %v193, 0
        %v206 = vsel %vm198, %v194, 0
        %208 = vmatprep.subr.mxu0 0.0
        %209 = vmatpush1.msra.mxu0 0.0
        %210 = vmatprep.subr.mxu0 0.0
        %211 = vmatpush1.msra.mxu0 0.0
        %212 = vmatprep.subr.mxu0 0.0
        %213 = vmatpush1.msra.mxu0 0.0
        %214 = vmatprep.subr.mxu0 0.0
        %215 = vmatpush1.msra.mxu0 0.0
        %216 = vmatprep.subr.mxu0 0.0
        %217 = vmatpush1.msra.mxu0 0.0
        %218 = vmatprep.subr.mxu0 0.0
        %219 = vmatpush1.msra.mxu0 0.0
        %220 = vmatprep.subr.mxu0 0.0
        %221 = vmatpush1.msra.mxu0 0.0
        %222 = vmatprep.subr.mxu0 0.0
        %223 = vmatpush1.msra.mxu0 0.0
        %224 = vmatprep.subr.mxu0 0.0
        %225 = vmatpush1.msra.mxu0 0.0
        %226 = vmatprep.subr.mxu0 0.0
        %227 = vmatpush1.msra.mxu0 0.0
        %228 = vmatprep.subr.mxu0 0.0
        %229 = vmatpush1.msra.mxu0 0.0
        %230 = vmatprep.subr.mxu0 0.0
        %231 = vmatpush1.msra.mxu0 0.0
        %232 = vmatprep.subr.mxu0 0.0
        %233 = vmatpush1.msra.mxu0 0.0
        %234 = vmatprep.subr.mxu0 0.0
        %235 = vmatpush1.msra.mxu0 %v197
        %236 = vmatprep.subr.mxu0 0.0
        %237 = vmatpush1.msra.mxu0 %v196
        %238 = vmatprep.subr.mxu0 0.0
        %239 = vmatpush1.msra.mxu0 %v195
        %240 = vmatprep.subr.mxu0 0.0
        %241 = vmatpush2.msra.mxu0 0.0
        %242 = vmatprep.subr.mxu0 0.0
        %243 = vmatpush2.msra.mxu0 0.0
        %244 = vmatprep.subr.mxu0 0.0
        %245 = vmatpush2.msra.mxu0 0.0
        %246 = vmatprep.subr.mxu0 0.0
        %247 = vmatpush2.msra.mxu0 0.0
        %248 = vmatprep.subr.mxu0 0.0
        %249 = vmatpush2.msra.mxu0 0.0
        %250 = vmatprep.subr.mxu0 0.0
        %251 = vmatpush2.msra.mxu0 0.0
        %252 = vmatprep.subr.mxu0 0.0
        %253 = vmatpush2.msra.mxu0 0.0
        %254 = vmatprep.subr.mxu0 0.0
        %255 = vmatpush2.msra.mxu0 0.0
        %256 = vmatprep.subr.mxu0 0.0
        %257 = vmatpush2.msra.mxu0 0.0
        %258 = vmatprep.subr.mxu0 0.0
        %259 = vmatpush2.msra.mxu0 0.0
        %260 = vmatprep.subr.mxu0 0.0
        %261 = vmatpush2.msra.mxu0 0.0
        %262 = vmatprep.subr.mxu0 0.0
        %263 = vmatpush2.msra.mxu0 0.0
        %264 = vmatprep.subr.mxu0 0.0
        %265 = vmatpush2.msra.mxu0 0.0
        %266 = vmatprep.subr.mxu0 0.0
        %267 = vmatpush2.msra.mxu0 0.0
        %268 = vmatprep.subr.mxu0 0.0
        %269 = vmatpush2.msra.mxu0 0.0
        %270 = vmatprep.subr.mxu0 0.0
        %271 = vmatpush2.msra.mxu0 0.0
        %272 = vmatprep.mubr.f32.mxu0 0.0
        %273 = vmatmul.mubr.f32.gmra.mxu0 %v200
        %v274 = vpop.f32.mrf.mxu0
        %v275 = vadd.f32 0.0, %v274
        %v276 = vpop.f32.mrf.mxu0
        %277 = vmatprep.mubr.f32.mxu0 0.0
        %278 = vmatmul.mubr.f32.gmra.mxu0 %v203
        %v279 = vpop.f32.mrf.mxu0
        %v280 = vadd.f32 0.0, %v279
        %v281 = vpop.f32.mrf.mxu0
        %282 = vmatprep.mubr.f32.mxu0 0.0
        %283 = vmatmul.mubr.f32.gmra.mxu0 %v206
        %v284 = vpop.f32.mrf.mxu0
        %v285 = vadd.f32 0.0, %v284
        %v286 = vpop.f32.mrf.mxu0
        %287 = vdwg.mxu0
        %288 = vst [vmem:[%s140] sm:$0xff] %v275
        %289 = vst [vmem:[%s140 + $0x8] sm:$0xff] %v280
        %290 = vst [vmem:[%s140 + $0x10] sm:$0xff] %v285
        %s291 = sadd.s32 %s143, 1
        %s292 = sld [smem:[#allocation3 + %s291]]
        %s293 = sadd.s32 %s292, 7
        %v294 = vstv %s293
        %vm295 = vcmp.lt.s32.totalorder %v145, %v294
        %vm296 = vcmp.lt.s32.totalorder %v146, %v294
        %vm297 = vcmp.lt.s32.totalorder %v147, %v294
        %vm298 = vmand %vm151, %vm295
        %vm299 = vmand %vm152, %vm296
        %vm300 = vmand %vm153, %vm297
        %vm301 = vcmp.ge.s32.totalorder %v145, %v294
        %vm302 = vcmp.ge.s32.totalorder %v146, %v294
        %vm303 = vcmp.ge.s32.totalorder %v147, %v294
        %s304 = sadd.s32 %s292, 13
        %v305 = vstv %s304
        %vm306 = vcmp.lt.s32.totalorder %v145, %v305
        %vm307 = vcmp.lt.s32.totalorder %v146, %v305
        %vm308 = vcmp.lt.s32.totalorder %v147, %v305
        %vm309 = vmand %vm301, %vm306
        %vm310 = vmand %vm302, %vm307
        %vm311 = vmand %vm303, %vm308
        %v312 = vstv %s292
        %v313 = vsub.s32 %v145, %v312
        %v314 = vsub.s32 %v146, %v312
        %v315 = vsub.s32 %v147, %v312
        %v316 = vsel %vm309, %v313, %v145
        %v317 = vsel %vm310, %v314, %v146
        %v318 = vsel %vm311, %v315, %v147
        %v319 = vsel %vm298, %v173, %v316
        %v320 = vsel %vm299, %v174, %v317
        %v321 = vsel %vm300, %v175, %v318
        %vm322 = vcmp.eq.s32.totalorder %v149, %v319
        %vm323 = vcmp.eq.s32.totalorder %v149, %v320
        %vm324 = vcmp.eq.s32.totalorder %v149, %v321
        %v325 = vsel %vm322, 1, 0
        %v326 = vsel %vm323, 1, 0
        %v327 = vsel %vm324, 1, 0
        %v328 = vcvt.s32.f32 %v325
        %v329 = vcvt.s32.f32 %v326
        %v330 = vcvt.s32.f32 %v327
        %s331 = scalar_lea.vmem %s122, 24 [#allocation4]
        %v332 = vld [vmem:[%s331] sm:$0xff]
        %v333 = vld [vmem:[%s331 + $0x8] sm:$0xff]
        %v334 = vld [vmem:[%s331 + $0x10] sm:$0xff]
        %v336 = vsel %vm198, %v328, 0
        %v339 = vsel %vm198, %v329, 0
        %v342 = vsel %vm198, %v330, 0
        %344 = vmatprep.subr.mxu0 0.0
        %345 = vmatpush1.msra.mxu0 0.0
        %346 = vmatprep.subr.mxu0 0.0
        %347 = vmatpush1.msra.mxu0 0.0
        %348 = vmatprep.subr.mxu0 0.0
        %349 = vmatpush1.msra.mxu0 0.0
        %350 = vmatprep.subr.mxu0 0.0
        %351 = vmatpush1.msra.mxu0 0.0
        %352 = vmatprep.subr.mxu0 0.0
        %353 = vmatpush1.msra.mxu0 0.0
        %354 = vmatprep.subr.mxu0 0.0
        %355 = vmatpush1.msra.mxu0 0.0
        %356 = vmatprep.subr.mxu0 0.0
        %357 = vmatpush1.msra.mxu0 0.0
        %358 = vmatprep.subr.mxu0 0.0
        %359 = vmatpush1.msra.mxu0 0.0
        %360 = vmatprep.subr.mxu0 0.0
        %361 = vmatpush1.msra.mxu0 0.0
        %362 = vmatprep.subr.mxu0 0.0
        %363 = vmatpush1.msra.mxu0 0.0
        %364 = vmatprep.subr.mxu0 0.0
        %365 = vmatpush1.msra.mxu0 0.0
        %366 = vmatprep.subr.mxu0 0.0
        %367 = vmatpush1.msra.mxu0 0.0
        %368 = vmatprep.subr.mxu0 0.0
        %369 = vmatpush1.msra.mxu0 0.0
        %370 = vmatprep.subr.mxu0 0.0
        %371 = vmatpush1.msra.mxu0 %v334
        %372 = vmatprep.subr.mxu0 0.0
        %373 = vmatpush1.msra.mxu0 %v333
        %374 = vmatprep.subr.mxu0 0.0
        %375 = vmatpush1.msra.mxu0 %v332
        %376 = vmatprep.subr.mxu0 0.0
        %377 = vmatpush2.msra.mxu0 0.0
        %378 = vmatprep.subr.mxu0 0.0
        %379 = vmatpush2.msra.mxu0 0.0
        %380 = vmatprep.subr.mxu0 0.0
        %381 = vmatpush2.msra.mxu0 0.0
        %382 = vmatprep.subr.mxu0 0.0
        %383 = vmatpush2.msra.mxu0 0.0
        %384 = vmatprep.subr.mxu0 0.0
        %385 = vmatpush2.msra.mxu0 0.0
        %386 = vmatprep.subr.mxu0 0.0
        %387 = vmatpush2.msra.mxu0 0.0
        %388 = vmatprep.subr.mxu0 0.0
        %389 = vmatpush2.msra.mxu0 0.0
        %390 = vmatprep.subr.mxu0 0.0
        %391 = vmatpush2.msra.mxu0 0.0
        %392 = vmatprep.subr.mxu0 0.0
        %393 = vmatpush2.msra.mxu0 0.0
        %394 = vmatprep.subr.mxu0 0.0
        %395 = vmatpush2.msra.mxu0 0.0
        %396 = vmatprep.subr.mxu0 0.0
        %397 = vmatpush2.msra.mxu0 0.0
        %398 = vmatprep.subr.mxu0 0.0
        %399 = vmatpush2.msra.mxu0 0.0
        %400 = vmatprep.subr.mxu0 0.0
        %401 = vmatpush2.msra.mxu0 0.0
        %402 = vmatprep.subr.mxu0 0.0
        %403 = vmatpush2.msra.mxu0 0.0
        %404 = vmatprep.subr.mxu0 0.0
        %405 = vmatpush2.msra.mxu0 0.0
        %406 = vmatprep.subr.mxu0 0.0
        %407 = vmatpush2.msra.mxu0 0.0
        %408 = vmatprep.mubr.f32.mxu0 0.0
        %409 = vmatmul.mubr.f32.gmra.mxu0 %v336
        %v410 = vpop.f32.mrf.mxu0
        %v411 = vadd.f32 0.0, %v410
        %v412 = vpop.f32.mrf.mxu0
        %413 = vmatprep.mubr.f32.mxu0 0.0
        %414 = vmatmul.mubr.f32.gmra.mxu0 %v339
        %v415 = vpop.f32.mrf.mxu0
        %v416 = vadd.f32 0.0, %v415
        %v417 = vpop.f32.mrf.mxu0
        %418 = vmatprep.mubr.f32.mxu0 0.0
        %419 = vmatmul.mubr.f32.gmra.mxu0 %v342
        %v420 = vpop.f32.mrf.mxu0
        %v421 = vadd.f32 0.0, %v420
        %v422 = vpop.f32.mrf.mxu0
        %423 = vdwg.mxu0
        %s424 = scalar_lea.vmem %s140, 24 [#allocation7]
        %425 = vst [vmem:[%s424] sm:$0xff] %v411
        %426 = vst [vmem:[%s424 + $0x8] sm:$0xff] %v416
        %427 = vst [vmem:[%s424 + $0x10] sm:$0xff] %v421
        %s428 = sadd.s32 %s143, 2
        %s429 = sld [smem:[#allocation3 + %s428]]
        %s430 = sadd.s32 %s429, 7
        %v431 = vstv %s430
        %vm432 = vcmp.lt.s32.totalorder %v145, %v431
        %vm433 = vcmp.lt.s32.totalorder %v146, %v431
        %vm434 = vcmp.lt.s32.totalorder %v147, %v431
        %vm435 = vmand %vm151, %vm432
        %vm436 = vmand %vm152, %vm433
        %vm437 = vmand %vm153, %vm434
        %vm438 = vcmp.ge.s32.totalorder %v145, %v431
        %vm439 = vcmp.ge.s32.totalorder %v146, %v431
        %vm440 = vcmp.ge.s32.totalorder %v147, %v431
        %s441 = sadd.s32 %s429, 13
        %v442 = vstv %s441
        %vm443 = vcmp.lt.s32.totalorder %v145, %v442
        %vm444 = vcmp.lt.s32.totalorder %v146, %v442
        %vm445 = vcmp.lt.s32.totalorder %v147, %v442
        %vm446 = vmand %vm438, %vm443
        %vm447 = vmand %vm439, %vm444
        %vm448 = vmand %vm440, %vm445
        %v449 = vstv %s429
        %v450 = vsub.s32 %v145, %v449
        %v451 = vsub.s32 %v146, %v449
        %v452 = vsub.s32 %v147, %v449
        %v453 = vsel %vm446, %v450, %v145
        %v454 = vsel %vm447, %v451, %v146
        %v455 = vsel %vm448, %v452, %v147
        %v456 = vsel %vm435, %v173, %v453
        %v457 = vsel %vm436, %v174, %v454
        %v458 = vsel %vm437, %v175, %v455
        %vm459 = vcmp.eq.s32.totalorder %v149, %v456
        %vm460 = vcmp.eq.s32.totalorder %v149, %v457
        %vm461 = vcmp.eq.s32.totalorder %v149, %v458
        %v462 = vsel %vm459, 1, 0
        %v463 = vsel %vm460, 1, 0
        %v464 = vsel %vm461, 1, 0
        %v465 = vcvt.s32.f32 %v462
        %v466 = vcvt.s32.f32 %v463
        %v467 = vcvt.s32.f32 %v464
        %s468 = scalar_lea.vmem %s122, 48 [#allocation4]
        %v469 = vld [vmem:[%s468] sm:$0xff]
        %v470 = vld [vmem:[%s468 + $0x8] sm:$0xff]
        %v471 = vld [vmem:[%s468 + $0x10] sm:$0xff]
        %v473 = vsel %vm198, %v465, 0
        %v476 = vsel %vm198, %v466, 0
        %v479 = vsel %vm198, %v467, 0
        %481 = vmatprep.subr.mxu0 0.0
        %482 = vmatpush1.msra.mxu0 0.0
        %483 = vmatprep.subr.mxu0 0.0
        %484 = vmatpush1.msra.mxu0 0.0
        %485 = vmatprep.subr.mxu0 0.0
        %486 = vmatpush1.msra.mxu0 0.0
        %487 = vmatprep.subr.mxu0 0.0
        %488 = vmatpush1.msra.mxu0 0.0
        %489 = vmatprep.subr.mxu0 0.0
        %490 = vmatpush1.msra.mxu0 0.0
        %491 = vmatprep.subr.mxu0 0.0
        %492 = vmatpush1.msra.mxu0 0.0
        %493 = vmatprep.subr.mxu0 0.0
        %494 = vmatpush1.msra.mxu0 0.0
        %495 = vmatprep.subr.mxu0 0.0
        %496 = vmatpush1.msra.mxu0 0.0
        %497 = vmatprep.subr.mxu0 0.0
        %498 = vmatpush1.msra.mxu0 0.0
        %499 = vmatprep.subr.mxu0 0.0
        %500 = vmatpush1.msra.mxu0 0.0
        %501 = vmatprep.subr.mxu0 0.0
        %502 = vmatpush1.msra.mxu0 0.0
        %503 = vmatprep.subr.mxu0 0.0
        %504 = vmatpush1.msra.mxu0 0.0
        %505 = vmatprep.subr.mxu0 0.0
        %506 = vmatpush1.msra.mxu0 0.0
        %507 = vmatprep.subr.mxu0 0.0
        %508 = vmatpush1.msra.mxu0 %v471
        %509 = vmatprep.subr.mxu0 0.0
        %510 = vmatpush1.msra.mxu0 %v470
        %511 = vmatprep.subr.mxu0 0.0
        %512 = vmatpush1.msra.mxu0 %v469
        %513 = vmatprep.subr.mxu0 0.0
        %514 = vmatpush2.msra.mxu0 0.0
        %515 = vmatprep.subr.mxu0 0.0
        %516 = vmatpush2.msra.mxu0 0.0
        %517 = vmatprep.subr.mxu0 0.0
        %518 = vmatpush2.msra.mxu0 0.0
        %519 = vmatprep.subr.mxu0 0.0
        %520 = vmatpush2.msra.mxu0 0.0
        %521 = vmatprep.subr.mxu0 0.0
        %522 = vmatpush2.msra.mxu0 0.0
        %523 = vmatprep.subr.mxu0 0.0
        %524 = vmatpush2.msra.mxu0 0.0
        %525 = vmatprep.subr.mxu0 0.0
        %526 = vmatpush2.msra.mxu0 0.0
        %527 = vmatprep.subr.mxu0 0.0
        %528 = vmatpush2.msra.mxu0 0.0
        %529 = vmatprep.subr.mxu0 0.0
        %530 = vmatpush2.msra.mxu0 0.0
        %531 = vmatprep.subr.mxu0 0.0
        %532 = vmatpush2.msra.mxu0 0.0
        %533 = vmatprep.subr.mxu0 0.0
        %534 = vmatpush2.msra.mxu0 0.0
        %535 = vmatprep.subr.mxu0 0.0
        %536 = vmatpush2.msra.mxu0 0.0
        %537 = vmatprep.subr.mxu0 0.0
        %538 = vmatpush2.msra.mxu0 0.0
        %539 = vmatprep.subr.mxu0 0.0
        %540 = vmatpush2.msra.mxu0 0.0
        %541 = vmatprep.subr.mxu0 0.0
        %542 = vmatpush2.msra.mxu0 0.0
        %543 = vmatprep.subr.mxu0 0.0
        %544 = vmatpush2.msra.mxu0 0.0
        %545 = vmatprep.mubr.f32.mxu0 0.0
        %546 = vmatmul.mubr.f32.gmra.mxu0 %v473
        %v547 = vpop.f32.mrf.mxu0
        %v548 = vadd.f32 0.0, %v547
        %v549 = vpop.f32.mrf.mxu0
        %550 = vmatprep.mubr.f32.mxu0 0.0
        %551 = vmatmul.mubr.f32.gmra.mxu0 %v476
        %v552 = vpop.f32.mrf.mxu0
        %v553 = vadd.f32 0.0, %v552
        %v554 = vpop.f32.mrf.mxu0
        %555 = vmatprep.mubr.f32.mxu0 0.0
        %556 = vmatmul.mubr.f32.gmra.mxu0 %v479
        %v557 = vpop.f32.mrf.mxu0
        %v558 = vadd.f32 0.0, %v557
        %v559 = vpop.f32.mrf.mxu0
        %560 = vdwg.mxu0
        %s561 = scalar_lea.vmem %s140, 48 [#allocation7]
        %562 = vst [vmem:[%s561] sm:$0xff] %v548
        %563 = vst [vmem:[%s561 + $0x8] sm:$0xff] %v553
        %564 = vst [vmem:[%s561 + $0x10] sm:$0xff] %v558
        %s565 = sadd.s32 %s143, 3
        %s566 = sld [smem:[#allocation3 + %s565]]
        %s567 = sadd.s32 %s566, 7
        %v568 = vstv %s567
        %vm569 = vcmp.lt.s32.totalorder %v145, %v568
        %vm570 = vcmp.lt.s32.totalorder %v146, %v568
        %vm571 = vcmp.lt.s32.totalorder %v147, %v568
        %vm572 = vmand %vm151, %vm569
        %vm573 = vmand %vm152, %vm570
        %vm574 = vmand %vm153, %vm571
        %vm575 = vcmp.ge.s32.totalorder %v145, %v568
        %vm576 = vcmp.ge.s32.totalorder %v146, %v568
        %vm577 = vcmp.ge.s32.totalorder %v147, %v568
        %s578 = sadd.s32 %s566, 13
        %v579 = vstv %s578
        %vm580 = vcmp.lt.s32.totalorder %v145, %v579
        %vm581 = vcmp.lt.s32.totalorder %v146, %v579
        %vm582 = vcmp.lt.s32.totalorder %v147, %v579
        %vm583 = vmand %vm575, %vm580
        %vm584 = vmand %vm576, %vm581
        %vm585 = vmand %vm577, %vm582
        %v586 = vstv %s566
        %v587 = vsub.s32 %v145, %v586
        %v588 = vsub.s32 %v146, %v586
        %v589 = vsub.s32 %v147, %v586
        %v590 = vsel %vm583, %v587, %v145
        %v591 = vsel %vm584, %v588, %v146
        %v592 = vsel %vm585, %v589, %v147
        %v593 = vsel %vm572, %v173, %v590
        %v594 = vsel %vm573, %v174, %v591
        %v595 = vsel %vm574, %v175, %v592
        %vm596 = vcmp.eq.s32.totalorder %v149, %v593
        %vm597 = vcmp.eq.s32.totalorder %v149, %v594
        %vm598 = vcmp.eq.s32.totalorder %v149, %v595
        %v599 = vsel %vm596, 1, 0
        %v600 = vsel %vm597, 1, 0
        %v601 = vsel %vm598, 1, 0
        %v602 = vcvt.s32.f32 %v599
        %v603 = vcvt.s32.f32 %v600
        %v604 = vcvt.s32.f32 %v601
        %s605 = scalar_lea.vmem %s122, 72 [#allocation4]
        %v606 = vld [vmem:[%s605] sm:$0xff]
        %v607 = vld [vmem:[%s605 + $0x8] sm:$0xff]
        %v608 = vld [vmem:[%s605 + $0x10] sm:$0xff]
        %v610 = vsel %vm198, %v602, 0
        %v613 = vsel %vm198, %v603, 0
        %v616 = vsel %vm198, %v604, 0
        %618 = vmatprep.subr.mxu0 0.0
        %619 = vmatpush1.msra.mxu0 0.0
        %620 = vmatprep.subr.mxu0 0.0
        %621 = vmatpush1.msra.mxu0 0.0
        %622 = vmatprep.subr.mxu0 0.0
        %623 = vmatpush1.msra.mxu0 0.0
        %624 = vmatprep.subr.mxu0 0.0
        %625 = vmatpush1.msra.mxu0 0.0
        %626 = vmatprep.subr.mxu0 0.0
        %627 = vmatpush1.msra.mxu0 0.0
        %628 = vmatprep.subr.mxu0 0.0
        %629 = vmatpush1.msra.mxu0 0.0
        %630 = vmatprep.subr.mxu0 0.0
        %631 = vmatpush1.msra.mxu0 0.0
        %632 = vmatprep.subr.mxu0 0.0
        %633 = vmatpush1.msra.mxu0 0.0
        %634 = vmatprep.subr.mxu0 0.0
        %635 = vmatpush1.msra.mxu0 0.0
        %636 = vmatprep.subr.mxu0 0.0
        %637 = vmatpush1.msra.mxu0 0.0
        %638 = vmatprep.subr.mxu0 0.0
        %639 = vmatpush1.msra.mxu0 0.0
        %640 = vmatprep.subr.mxu0 0.0
        %641 = vmatpush1.msra.mxu0 0.0
        %642 = vmatprep.subr.mxu0 0.0
        %643 = vmatpush1.msra.mxu0 0.0
        %644 = vmatprep.subr.mxu0 0.0
        %645 = vmatpush1.msra.mxu0 %v608
        %646 = vmatprep.subr.mxu0 0.0
        %647 = vmatpush1.msra.mxu0 %v607
        %648 = vmatprep.subr.mxu0 0.0
        %649 = vmatpush1.msra.mxu0 %v606
        %650 = vmatprep.subr.mxu0 0.0
        %651 = vmatpush2.msra.mxu0 0.0
        %652 = vmatprep.subr.mxu0 0.0
        %653 = vmatpush2.msra.mxu0 0.0
        %654 = vmatprep.subr.mxu0 0.0
        %655 = vmatpush2.msra.mxu0 0.0
        %656 = vmatprep.subr.mxu0 0.0
        %657 = vmatpush2.msra.mxu0 0.0
        %658 = vmatprep.subr.mxu0 0.0
        %659 = vmatpush2.msra.mxu0 0.0
        %660 = vmatprep.subr.mxu0 0.0
        %661 = vmatpush2.msra.mxu0 0.0
        %662 = vmatprep.subr.mxu0 0.0
        %663 = vmatpush2.msra.mxu0 0.0
        %664 = vmatprep.subr.mxu0 0.0
        %665 = vmatpush2.msra.mxu0 0.0
        %666 = vmatprep.subr.mxu0 0.0
        %667 = vmatpush2.msra.mxu0 0.0
        %668 = vmatprep.subr.mxu0 0.0
        %669 = vmatpush2.msra.mxu0 0.0
        %670 = vmatprep.subr.mxu0 0.0
        %671 = vmatpush2.msra.mxu0 0.0
        %672 = vmatprep.subr.mxu0 0.0
        %673 = vmatpush2.msra.mxu0 0.0
        %674 = vmatprep.subr.mxu0 0.0
        %675 = vmatpush2.msra.mxu0 0.0
        %676 = vmatprep.subr.mxu0 0.0
        %677 = vmatpush2.msra.mxu0 0.0
        %678 = vmatprep.subr.mxu0 0.0
        %679 = vmatpush2.msra.mxu0 0.0
        %680 = vmatprep.subr.mxu0 0.0
        %681 = vmatpush2.msra.mxu0 0.0
        %682 = vmatprep.mubr.f32.mxu0 0.0
        %683 = vmatmul.mubr.f32.gmra.mxu0 %v610
        %v684 = vpop.f32.mrf.mxu0
        %v685 = vadd.f32 0.0, %v684
        %v686 = vpop.f32.mrf.mxu0
        %687 = vmatprep.mubr.f32.mxu0 0.0
        %688 = vmatmul.mubr.f32.gmra.mxu0 %v613
        %v689 = vpop.f32.mrf.mxu0
        %v690 = vadd.f32 0.0, %v689
        %v691 = vpop.f32.mrf.mxu0
        %692 = vmatprep.mubr.f32.mxu0 0.0
        %693 = vmatmul.mubr.f32.gmra.mxu0 %v616
        %v694 = vpop.f32.mrf.mxu0
        %v695 = vadd.f32 0.0, %v694
        %v696 = vpop.f32.mrf.mxu0
        %697 = vdwg.mxu0
        %s698 = scalar_lea.vmem %s140, 72 [#allocation7]
        %699 = vst [vmem:[%s698] sm:$0xff] %v685
        %700 = vst [vmem:[%s698 + $0x8] sm:$0xff] %v690
        %701 = vst [vmem:[%s698 + $0x10] sm:$0xff] %v695
        %s702 = sand.u32 %s57, 1
        %s703 = scalar_lea.sflag [#allocation6], %s702
        %s704 = sand.u32 %s57, 1
        %s705 = smul.addr %s704, 96
        %s706 = scalar_lea.vmem [#allocation7], %s705
        // Predicated region
        $region29: #{tpu_custom_call.1} parent=23 // pred_check
          %p707 = pneg %p67
        $region30: #{tpu_custom_call.1} parent=23 // pred_check_branch
          %709 = sbr.rel (%p707) target = $region32
        $region31: #{tpu_custom_call.1} parent=23 // pred_region
          %s710 = smul.u32 4, %s23
          %s712 = ssub.s32 1536, 1536
          %713 = vsyncadd %s703, %s712
          %s714 = smul.addr %s710, 3
          %s715 = smul.addr %s714, 128
          %s716 = scalar_lea.hbm %s2, %s715
          %s717 = sshll.u32 %s706, 4
          %s718 = int_to_ptr.vmem [resolvable:$true] %s717
          %723 = dma.vmem_to_hbm [thread:$0]  %s718, 1536, %s716, %s703, 128, 128, 8
        $region32: #{tpu_custom_call.1} parent=23 // pred_fallthru
          _
      $region24: #{tpu_custom_call.1} parent=5 // pred_fallthru
        _
      %p724 = scmp.le.s32.totalorder 2, %s18
      // Predicated region
      $region33: #{tpu_custom_call.1} parent=5 // pred_check
        %p725 = pneg %p724
      $region34: #{tpu_custom_call.1} parent=5 // pred_check_branch
        %727 = sbr.rel (%p725) target = $region36
      $region35: #{tpu_custom_call.1} parent=5 // pred_region
        %s728 = ssub.s32 %s18, 2
        // Predicated region
        $region37: #{tpu_custom_call.1} parent=35 // pred_check
          %p729 = pneg %p73
        $region38: #{tpu_custom_call.1} parent=35 // pred_check_branch
          %731 = sbr.rel (%p729) target = $region40
        $region39: #{tpu_custom_call.1} parent=35 // pred_region
          %s732 = sand.u32 %s58, 1
          %s733 = scalar_lea.sflag [#allocation6], %s732
          %s734 = sand.u32 %s58, 1
          %s735 = smul.addr %s734, 96
          %s736 = scalar_lea.vmem [#allocation7], %s735
          %737 = dma.done %s733, 1536
        $region40: #{tpu_custom_call.1} parent=35 // pred_fallthru
          _
      $region36: #{tpu_custom_call.1} parent=5 // pred_fallthru
        _
    $region6: #{tpu_custom_call.1} parent=1 // loop_footer
      %s22 = sadd.s32 1, %s18
    $region7: #{tpu_custom_call.1} parent=1 // loop_footer_branch
      %17 = sbr.rel target = $region3
    $region8: #{tpu_custom_call.1} parent=1 // loop_exit
      _
    %738 = vsyncpa [#allocation5], 1
    %s739 = scalar_lea.sflag [#allocation5], 1
    %740 = vsyncpa %s739, 1
    %741 = vsyncpa [#allocation6], 1
    %s742 = scalar_lea.sflag [#allocation6], 1
    %743 = vsyncpa %s742, 1

</llo_original>
